<compile_context>
chip_gen: v7x
topology: tpu7x:2x2x1
jax: 0.10.0
libtpu: 0.0.40
codegen_flags: <defaults>
</compile_context>

<pallas_src>
import functools

import jax
import jax.numpy as jnp
from jax.experimental import pallas as pl
from jax.experimental.pallas import tpu as pltpu


def _int_pow(t, n):
    """t ** n for a positive Python int n via exponentiation-by-squaring (VPU only)."""
    result = None
    base = t
    while True:
        if n & 1:
            result = base if result is None else result * base
        n >>= 1
        if n == 0:
            return result
        base = base * base


def _make_bellmf_kernel(a, b, c):
    """Build a kernel with a, b, c folded in as compile-time constants."""
    a = float(a)
    b = float(b)
    c = float(c)
    inv_a2 = 1.0 / (a * a)
    b_int = int(b) if (b == int(b) and b >= 0.0) else None

    def kernel(x_ref, o_ref):
        x = x_ref[...].astype(jnp.float32)
        d = x - c
        dist = (d * d) * inv_a2                       # ((x-c)/a)^2, divide-free
        if b_int is None:
            # Non-integer / negative exponent: single pow remains.
            t = jnp.power(dist, b)
        elif b_int == 0:
            t = jnp.ones_like(dist)
        else:
            t = _int_pow(dist, b_int)                 # repeated VPU multiplies
        denom = 1.0 + t
        r = pl.reciprocal(denom, approx=True)         # EUP vrcp (otherwise idle slot)
        r = r * (2.0 - denom * r)                     # one Newton step -> ~f32 precision
        o_ref[...] = r.astype(o_ref.dtype)

    return kernel


def _choose_slab(total):
    """Widest lane-dense (rows, width) factorization of `total` with width % 128 == 0."""
    for width in (2048, 1024, 512, 256, 128):
        if total % width == 0:
            return total // width, width
    raise ValueError(
        "BellMF Pallas kernel requires total element count to be a multiple of 128, "
        f"got {total}")


def bellmf_forward(x, a, b, c):
    """Elementwise generalized-bell membership function via a Pallas TPU kernel."""
    orig_shape = x.shape
    total = x.size
    rows, width = _choose_slab(total)
    x2 = x.reshape(rows, width)                       # lane-dense 2-D slab, no copy passes

    itemsize = jnp.dtype(x2.dtype).itemsize
    # Target ~512 KiB per input tile; keep the sublane dim a multiple of 8.
    target_rows = max(8, (512 * 1024) // (width * itemsize))
    target_rows = (target_rows // 8) * 8

    if rows <= target_rows:
        block_rows = rows                             # whole array in one block (full dim)
    else:
        block_rows = target_rows                      # partial trailing block handled by Pallas
    grid = (pl.cdiv(rows, block_rows),)

    kernel = _make_bellmf_kernel(a, b, c)

    out2 = pl.pallas_call(
        kernel,
        out_shape=jax.ShapeDtypeStruct((rows, width), x2.dtype),
        grid=grid,
        in_specs=[pl.BlockSpec((block_rows, width), lambda i: (i, 0))],
        out_specs=pl.BlockSpec((block_rows, width), lambda i: (i, 0)),
        compiler_params=pltpu.CompilerParams(
            dimension_semantics=("parallel",)),
    )(x2)

    return out2.reshape(orig_shape)


# TODO(synk): BellMF.b_log is a backward-pass gradient hook (NaN scrubbing); it has
# no forward-pass equivalent and is intentionally not implemented here.


if __name__ == "__main__":
    # Deterministic scalar parameters (as BellMF.__init__ would receive them).
    a, b, c = 2.0, 3.0, 0.5

    key = jax.random.PRNGKey(0)
    x = jax.random.normal(key, (2, 4, 16, 16), dtype=jnp.float32)  # NCHW

    y = jax.block_until_ready(bellmf_forward(x, a, b, c))

    # Pure-JAX reference matching the PyTorch forward.
    dist = ((x - c) / a) ** 2
    y_ref = 1.0 / (1.0 + jnp.power(dist, b))

    assert y.shape == x.shape
    assert y.dtype == x.dtype
    assert jnp.allclose(y, y_ref, rtol=1e-4, atol=1e-5), "mismatch vs reference"

    print("KERNEL_OK")
</pallas_src>

<mosaic_0001>
module attributes {stable_mosaic.version = 11 : i64} {
  func.func @kernel(%arg0: i32, %arg1: memref<1x2048xf32, #tpu.memory_space<vmem>>, %arg2: memref<1x2048xf32, #tpu.memory_space<vmem>>) attributes {dimension_semantics = [#tpu.dimension_semantics<parallel>], iteration_bounds = array<i64: 1>, scalar_prefetch = 0 : i64, scratch_operands = 0 : i64, tpu.core_type = #tpu.core_type<tc>, window_params = [{transform_indices = @transform_0, window_bounds = array<i64: 1, 2048>}, {transform_indices = @transform_1, window_bounds = array<i64: 1, 2048>}]} {
    %c0 = arith.constant 0 : index
    %c0_0 = arith.constant 0 : index
    %0 = vector.load %arg1[%c0, %c0_0] : memref<1x2048xf32, #tpu.memory_space<vmem>>, vector<1x2048xf32>
    %cst = arith.constant 5.000000e-01 : f32
    %1 = vector.broadcast %cst : f32 to vector<1x2048xf32>
    %2 = arith.subf %0, %1 : vector<1x2048xf32>
    %3 = arith.mulf %2, %2 : vector<1x2048xf32>
    %cst_1 = arith.constant 2.500000e-01 : f32
    %4 = vector.broadcast %cst_1 : f32 to vector<1x2048xf32>
    %5 = arith.mulf %3, %4 : vector<1x2048xf32>
    %6 = arith.mulf %5, %5 : vector<1x2048xf32>
    %7 = arith.mulf %5, %6 : vector<1x2048xf32>
    %cst_2 = arith.constant 1.000000e+00 : f32
    %8 = vector.broadcast %cst_2 : f32 to vector<1x2048xf32>
    %9 = arith.addf %8, %7 : vector<1x2048xf32>
    %10 = tpu.reciprocal %9 {approx = true} : vector<1x2048xf32> -> vector<1x2048xf32>
    %11 = arith.mulf %9, %10 : vector<1x2048xf32>
    %cst_3 = arith.constant 2.000000e+00 : f32
    %12 = vector.broadcast %cst_3 : f32 to vector<1x2048xf32>
    %13 = arith.subf %12, %11 : vector<1x2048xf32>
    %14 = arith.mulf %10, %13 : vector<1x2048xf32>
    %c0_4 = arith.constant 0 : index
    %c0_5 = arith.constant 0 : index
    %15 = vector.load %arg2[%c0_4, %c0_5] : memref<1x2048xf32, #tpu.memory_space<vmem>>, vector<1x2048xf32>
    tpu.vector_store %arg2[%c0_4, %c0_5], %14 {strides = array<i32>} : memref<1x2048xf32, #tpu.memory_space<vmem>>, vector<1x2048xf32>,
    return
  }
  func.func @transform_0(%arg0: i32) -> (i32, i32) {
    %c0_i32 = arith.constant 0 : i32
    %c0_i32_0 = arith.constant 0 : i32
    return %arg0, %c0_i32 : i32, i32
  }
  func.func @transform_1(%arg0: i32) -> (i32, i32) {
    %c0_i32 = arith.constant 0 : i32
    %c0_i32_0 = arith.constant 0 : i32
    return %arg0, %c0_i32 : i32, i32
  }
}

</mosaic_0001>

<llo_original>
// kernel: tpu_custom_call.1
$region0: #{tpu_custom_call.1}
  #allocation0 [shape = 'u32[]', space=smem, size = 0x4, offset = 0x4, fixed_abs, tag = 'smem constant byte address 0x4 - core index']
  #allocation1 [shape = 'u32[144,128]{1,0:T(1,128)}', space=vmem, size = 0x12000, scoped, tag = 'internal scratch']
  %s0 = inlined_call_operand.hbm [shape: f32[1,2048], index: 0, kind: input, shape index: {}]
  %s1 = inlined_call_operand.hbm [shape: f32[1,2048], index: 1, kind: output, shape index: {}]
  %s2 = sld [smem:[#allocation0]]
  $region18: #{tpu_custom_call.1} parent=0
    _
  %s4 = ssub.s32 1, %s2
  %s5 = scalar_select 0, %s4, %s2
  $region1: #{tpu_custom_call.1} parent=0
    #allocation2 [shape = 'u8[8192]{0}', space=vmem, size = 0x2000, scoped, tag = 'input window, operand 0, single buffered']
    #allocation3 [shape = 's32[1]{0}', space=sflag, size = 0x4, scoped, tag = 'scoped memory for tpu_custom_call.1']
    #allocation4 [shape = 's32[1]{0}', space=sflag, size = 0x4, scoped, tag = 'scoped memory for tpu_custom_call.1']
    #allocation5 [shape = 'u8[8192]{0}', space=vmem, size = 0x2000, scoped, tag = 'output window, operand 0, single buffered']
    %6 = vsyncpa [#allocation3], 0
    %7 = vsyncpa [#allocation4], 0
    // Predicated region
    $region2: #{tpu_custom_call.1} parent=1 // pred_check
      _
    $region3: #{tpu_custom_call.1} parent=1 // pred_check_branch
      %9 = sbr.rel (0) target = $region5
    $region4: #{tpu_custom_call.1} parent=1 // pred_region
      %s11 = ssub.s32 256, 256
      %12 = vsyncadd [#allocation3], %s11
      %s14 = sshll.u32 [#allocation2], 4
      %s15 = int_to_ptr.vmem [resolvable:$true] %s14
      %17 = dma.hbm_to_vmem [thread:$0]  %s0, 256, %s15, [#allocation3]
    $region5: #{tpu_custom_call.1} parent=1 // pred_fallthru
      _
    // Predicated region
    $region6: #{tpu_custom_call.1} parent=1 // pred_check
      _
    $region7: #{tpu_custom_call.1} parent=1 // pred_check_branch
      %19 = sbr.rel (0) target = $region9
    $region8: #{tpu_custom_call.1} parent=1 // pred_region
      %20 = dma.done [#allocation3], 256
    $region9: #{tpu_custom_call.1} parent=1 // pred_fallthru
      _
    %v21 = vld [vmem:[#allocation2] sm:$0xff]
    %v22 = vld [vmem:[#allocation2 + $0x8] sm:$0xff]
    %v23 = vsub.f32 %v21, 0.5
    %v24 = vsub.f32 %v22, 0.5
    %v25 = vmul.f32 %v23, %v23
    %v26 = vmul.f32 %v24, %v24
    %v27 = vmul.f32 %v25, 0.25
    %v28 = vmul.f32 %v26, 0.25
    %v29 = vmul.f32 %v27, %v27
    %v30 = vmul.f32 %v28, %v28
    %v31 = vmul.f32 %v27, %v29
    %v32 = vmul.f32 %v28, %v30
    %v33 = vadd.f32 %v31, 1.0
    %v34 = vadd.f32 %v32, 1.0
    %v35 = vrcp.pop %v33
    %v36 = vrcp.pop %v34
    %v37 = vmul.f32 %v33, %v35
    %v38 = vmul.f32 %v34, %v36
    %v39 = vsub.f32 2.0, %v37
    %v40 = vsub.f32 2.0, %v38
    %v41 = vmul.f32 %v35, %v39
    %v42 = vmul.f32 %v36, %v40
    %43 = vst [vmem:[#allocation5] sm:$0xff] %v41
    %44 = vst [vmem:[#allocation5 + $0x8] sm:$0xff] %v42
    // Predicated region
    $region10: #{tpu_custom_call.1} parent=1 // pred_check
      _
    $region11: #{tpu_custom_call.1} parent=1 // pred_check_branch
      %46 = sbr.rel (0) target = $region13
    $region12: #{tpu_custom_call.1} parent=1 // pred_region
      %s48 = ssub.s32 256, 256
      %49 = vsyncadd [#allocation4], %s48
      %s51 = sshll.u32 [#allocation5], 4
      %s52 = int_to_ptr.vmem [resolvable:$true] %s51
      %54 = dma.vmem_to_hbm [thread:$0]  %s52, 256, %s1, [#allocation4]
    $region13: #{tpu_custom_call.1} parent=1 // pred_fallthru
      _
    // Predicated region
    $region14: #{tpu_custom_call.1} parent=1 // pred_check
      _
    $region15: #{tpu_custom_call.1} parent=1 // pred_check_branch
      %56 = sbr.rel (0) target = $region17
    $region16: #{tpu_custom_call.1} parent=1 // pred_region
      %57 = dma.done [#allocation4], 256
    $region17: #{tpu_custom_call.1} parent=1 // pred_fallthru
      _
    %58 = vsyncpa [#allocation3], 1
    %59 = vsyncpa [#allocation4], 1

</llo_original>
